<compile_context>
chip_gen: v7x
topology: tpu7x:2x2x1
jax: 0.10.0
libtpu: 0.0.40
codegen_flags: <defaults>
</compile_context>

<pallas_src>
import functools

import numpy as np
import jax
import jax.numpy as jnp
from jax.experimental import pallas as pl
from jax.experimental.pallas import tpu as pltpu


def _round_up(a, m):
    return ((a + m - 1) // m) * m


# ---------------------------------------------------------------------------
# Parameter construction (deterministic, mirrors the PyTorch __init__)
# ---------------------------------------------------------------------------
def build_3d_sincos_position_embedding(grid_size, embed_dim, num_tokens=1,
                                       temperature=10000.0):
    h = w = d = grid_size
    gh = jnp.arange(h, dtype=jnp.float32)
    gw = jnp.arange(w, dtype=jnp.float32)
    gd = jnp.arange(d, dtype=jnp.float32)
    grid_h, grid_w, grid_d = jnp.meshgrid(gh, gw, gd, indexing="ij")
    assert embed_dim % 6 == 0, "Embed dimension must be divisible by 6"
    pos_dim = embed_dim // 6
    omega = jnp.arange(pos_dim, dtype=jnp.float32) / pos_dim
    omega = 1.0 / (temperature ** omega)
    out_h = jnp.einsum("m,d->md", grid_h.reshape(-1), omega)
    out_w = jnp.einsum("m,d->md", grid_w.reshape(-1), omega)
    out_d = jnp.einsum("m,d->md", grid_d.reshape(-1), omega)
    pos_emb = jnp.concatenate(
        [jnp.sin(out_h), jnp.cos(out_h),
         jnp.sin(out_w), jnp.cos(out_w),
         jnp.sin(out_d), jnp.cos(out_d)], axis=1)[None, :, :]
    assert num_tokens in (0, 1)
    if num_tokens == 1:
        pe_token = jnp.zeros((1, 1, embed_dim), dtype=jnp.float32)
        return jnp.concatenate([pe_token, pos_emb], axis=1)
    return pos_emb


# ---------------------------------------------------------------------------
# Pallas kernel
# ---------------------------------------------------------------------------
def _mask_completion_kernel(base_ref, pol_ref, x_ref, mask_ref, pos_ref, out_ref,
                            *, win, knock, highest):
    """One grid step: output rows of chunk `c` for batch block `g`.

    base_ref : (B, NC) int32 SMEM  exclusive per-chunk visible-count bases
    pol_ref  : (BB, NC, S) f32     lane-major 0/1 visibility, zero past L
    x_ref    : (BB, Lv, C)         visible tokens (model dtype, unpadded)
    mask_ref : (1, C)              mask token (model dtype)
    pos_ref  : (S, C)              pos-embed rows of this chunk (model dtype)
    out_ref  : (BB, S, C)          completed tokens for this chunk
    """
    g = pl.program_id(0)               # batch-block index
    c = pl.program_id(1)               # row-chunk index
    bb, S, _ = out_ref.shape
    Lv = x_ref.shape[1]
    f32 = jnp.float32

    # (S, S) constant: strictly-lower-triangular prefix-count matrix with
    # `knock` on the diagonal.  q[p] = (#visible before p within the chunk)
    # + knock * pol[p]; subtracting `knock` later pushes masked rows far
    # negative so they match no gather column.  Hoisted out of the batch loop.
    rows = jax.lax.broadcasted_iota(jnp.int32, (S, S), 0)
    cols = jax.lax.broadcasted_iota(jnp.int32, (S, S), 1)
    count_mat = (cols < rows).astype(f32) + float(knock) * (cols == rows).astype(f32)

    j_ids = jax.lax.broadcasted_iota(jnp.int32, (S, win), 1)     # window column ids
    pos_blk = pos_ref[...].astype(f32)                           # (S, C)
    mask_vec = mask_ref[...].astype(f32)                         # (1, C)
    prec = jax.lax.Precision.HIGHEST if highest else None        # exact f32 copies

    def body(b, carry):
        # Visible tokens in chunks strictly before this one (scalar prefetch).
        base = base_ref[g * bb + b, c]
        # All gather indices of this chunk lie in x rows [ws, ws + win).
        ws = jnp.maximum(jnp.minimum(base, Lv - win), 0)

        pol_row = pol_ref[b, pl.ds(c, 1), :]                            # (1, S)
        # within-chunk exclusive prefix (+ knock on visible rows), as a column.
        q_col = jnp.sum(count_mat * pol_row, axis=1, keepdims=True)     # (S, 1)
        local = q_col + (base - ws - knock).astype(f32)   # window-local rank
        vis = (local >= 0.0).astype(f32)                  # 1 = visible row

        # One-hot gather over the x window on the MXU; masked rows match no
        # column and therefore gather exactly zero.
        sel = (local.astype(jnp.int32) == j_ids).astype(x_ref.dtype)    # (S, win)
        x_win = x_ref[b, pl.ds(ws, win), :]                             # (win, C)
        gath = jnp.dot(sel, x_win, preferred_element_type=f32, precision=prec)

        # Mask fill + positional embedding on the VPU.  Rows past L in the last
        # (partial) chunk are computed too but discarded by the output DMA.
        res = gath + (1.0 - vis) * mask_vec + pos_blk
        out_ref[b, :, :] = res.astype(out_ref.dtype)
        return carry

    jax.lax.fori_loop(0, bb, body, 0)


# ---------------------------------------------------------------------------
# Wrapper
# ---------------------------------------------------------------------------
def _default_chunk():
    # 256-row chunks fill the 256x256 MXU on v6e / v7x; 128 elsewhere (v5e).
    try:
        kind = jax.devices()[0].device_kind.lower()
    except Exception:
        return 128
    return 256 if ("v6" in kind or "v7" in kind or "7x" in kind) else 128


def _vmem_block_bytes(bb, nc, s, lv, c, dtype):
    it = jnp.dtype(dtype).itemsize
    cp = _round_up(c, 128)
    x_b = bb * _round_up(max(lv, 1), 8) * cp * it
    pol_b = bb * _round_up(nc, 8) * _round_up(s, 128) * 4
    out_b = bb * s * cp * it
    pos_b = s * cp * it
    msk_b = 8 * cp * it
    return 2 * (x_b + pol_b + out_b + pos_b + msk_b)      # double-buffered


def _pick_batch_block(batch, max_bb, nc, s, lv, c, dtype, budget_bytes=32 << 20):
    """Largest divisor of `batch` that fits the VMEM budget, preferring >= 2
    total grid steps so the v7x megacore has work to split."""
    divs = sorted((d for d in range(1, batch + 1)
                   if batch % d == 0 and d <= max(1, max_bb)), reverse=True)
    feas = [d for d in divs
            if _vmem_block_bytes(d, nc, s, lv, c, dtype) <= budget_bytes] or [1]
    pref = [d for d in feas if (batch // d) * nc >= 2]
    return (pref or feas)[0]


def mask_completion_forward(x, policy, mask_token, pos_embed, *,
                            batch_block=8, chunk=None):
    """x: (B, Lv, C), policy: (B, L) in {0,1}, mask_token: (1,1,C), pos_embed: (1,L,C).

    Returns (B, L, C) in x.dtype with
      out[b, p] = (x[b, rank_b(p)] if policy[b, p] else mask_token) + pos_embed[0, p].
    Contract (same as the PyTorch module): policy[b].sum() == Lv for every b.
    """
    B, Lv, C = x.shape
    L = policy.shape[1]
    dt = x.dtype

    base_s = max(8, _round_up(int(chunk), 8)) if chunk is not None else _default_chunk()
    if L >= base_s:
        S = base_s
    elif L >= 128:
        S = 128
    else:
        S = max(8, (L // 8) * 8)          # keep the row block <= L (L >= 8 in practice)
    NC = -(-L // S)
    L_pad = NC * S
    W = min(S, Lv)                        # gather window width (x rows per chunk)
    KO = S + Lv + 1                       # masked-row knockout, > any valid rank

    # TODO(synk): the torch module runtime-asserts policy.sum(dim=1) == Lv; here
    # it is a documented contract (no cheap device-side assert inside jit).

    # Tiny wrapper-side ops (O(B*L)): lane-major policy chunks + per-chunk
    # exclusive visible-count bases for scalar prefetch.
    polf = policy.astype(jnp.float32)
    pol3 = jnp.pad(polf, ((0, 0), (0, L_pad - L))).reshape(B, NC, S)
    per_chunk = jnp.sum(pol3, axis=2)                                   # (B, NC)
    chunk_base = (jnp.cumsum(per_chunk, axis=1) - per_chunk).astype(jnp.int32)

    pos = jnp.pad(pos_embed.reshape(L, C).astype(dt), ((0, L_pad - L), (0, 0)))
    mask2 = mask_token.reshape(1, C).astype(dt)

    BB = _pick_batch_block(B, batch_block, NC, S, Lv, C, dt)
    est = _vmem_block_bytes(BB, NC, S, Lv, C, dt)
    vmem_limit = int(max(32 << 20, min(2 * est, 96 << 20)))

    kernel = functools.partial(_mask_completion_kernel, win=W, knock=KO,
                               highest=(jnp.dtype(dt) == jnp.float32))

    return pl.pallas_call(
        kernel,
        out_shape=jax.ShapeDtypeStruct((B, L, C), dt),
        grid_spec=pltpu.PrefetchScalarGridSpec(
            num_scalar_prefetch=1,
            grid=(B // BB, NC),
            in_specs=[
                # index_maps receive the scalar-prefetch ref as a trailing arg.
                pl.BlockSpec((BB, NC, S), lambda g, c, base: (g, 0, 0)),   # policy
                pl.BlockSpec((BB, Lv, C), lambda g, c, base: (g, 0, 0)),   # x (once per batch block)
                pl.BlockSpec((1, C), lambda g, c, base: (0, 0)),           # mask token
                pl.BlockSpec((S, C), lambda g, c, base: (c, 0)),           # pos-embed rows
            ],
            out_specs=pl.BlockSpec((BB, S, C), lambda g, c, base: (g, c, 0)),
        ),
        compiler_params=pltpu.CompilerParams(
            dimension_semantics=("parallel", "parallel"),
            vmem_limit_bytes=vmem_limit),
    )(chunk_base, pol3, x, mask2, pos)


# ---------------------------------------------------------------------------
# Pure-numpy reference of the PyTorch forward (for verification)
# ---------------------------------------------------------------------------
def ref_forward(x, policy, mask_token, pos_embed):
    x = np.asarray(x, dtype=np.float32)
    policy = np.asarray(policy, dtype=np.float32)
    mask_token = np.asarray(mask_token, dtype=np.float32)
    pos_embed = np.asarray(pos_embed, dtype=np.float32)
    B, Lv, C = x.shape
    L = policy.shape[1]
    out = np.zeros((B, L, C), np.float32)
    for b in range(B):
        r = 0
        for p in range(L):
            if policy[b, p] > 0.5:
                out[b, p] = x[b, r]
                r += 1
            else:
                out[b, p] = mask_token[0, 0]
        out[b] += pos_embed[0]
    return out


if __name__ == "__main__":
    key = jax.random.PRNGKey(0)

    def make_inputs(k, B, grid_size, embed_dim, Lv):
        L = grid_size ** 3 + 1
        kx, kp, km = jax.random.split(k, 3)
        x = jax.random.normal(kx, (B, Lv, embed_dim), dtype=jnp.float32)
        # mask_token is zeros at __init__ in the PyTorch module; a random value
        # is used here so the mask-fill path is actually exercised by the test.
        mask_token = jax.random.normal(km, (1, 1, embed_dim), dtype=jnp.float32)
        pos_embed = build_3d_sincos_position_embedding(grid_size, embed_dim,
                                                       num_tokens=1)
        policy = np.zeros((B, L), np.float32)
        for b, pk in enumerate(jax.random.split(kp, B)):
            vis = np.asarray(jax.random.permutation(pk, L))[:Lv]
            policy[b, vis] = 1.0
        assert int(policy.sum(axis=1).min()) == Lv == int(policy.sum(axis=1).max())
        return x, jnp.asarray(policy), mask_token, pos_embed

    k1, k2, k3 = jax.random.split(key, 3)

    # Case 1: tiny shapes (grid_size=2 -> L=9), multi-batch block, tiny window.
    x, policy, mask_token, pos_embed = make_inputs(k1, B=4, grid_size=2,
                                                   embed_dim=48, Lv=5)
    out = jax.block_until_ready(
        mask_completion_forward(x, policy, mask_token, pos_embed))
    ref = ref_forward(x, policy, mask_token, pos_embed)
    np.testing.assert_allclose(np.asarray(out), ref, rtol=1e-5, atol=1e-5)

    # Case 2: grid_size=6 -> L=217 -> two row chunks; exercises the per-chunk
    # scalar-prefetch bases and the partial last output block.
    x2, policy2, mask_token2, pos_embed2 = make_inputs(k2, B=2, grid_size=6,
                                                       embed_dim=48, Lv=100)
    out2 = jax.block_until_ready(
        mask_completion_forward(x2, policy2, mask_token2, pos_embed2))
    ref2 = ref_forward(x2, policy2, mask_token2, pos_embed2)
    np.testing.assert_allclose(np.asarray(out2), ref2, rtol=1e-5, atol=1e-5)

    # Case 3: grid_size=7 -> L=344, Lv=300 with a forced 128-row chunk so the
    # shifted / clamped gather window (ws > 0, unaligned) is exercised.
    x3, policy3, mask_token3, pos_embed3 = make_inputs(k3, B=2, grid_size=7,
                                                       embed_dim=48, Lv=300)
    out3 = jax.block_until_ready(
        mask_completion_forward(x3, policy3, mask_token3, pos_embed3, chunk=128))
    ref3 = ref_forward(x3, policy3, mask_token3, pos_embed3)
    np.testing.assert_allclose(np.asarray(out3), ref3, rtol=1e-5, atol=1e-5)

    # Case 4: bf16 activations with the device-default chunk (256 on v6e/v7x).
    # The one-hot gather stays exact; mask/pos adds and the final store round
    # to bf16.
    xb = x3.astype(jnp.bfloat16)
    outb = jax.block_until_ready(
        mask_completion_forward(xb, policy3, mask_token3, pos_embed3))
    refb = ref_forward(jnp.asarray(xb, jnp.float32), policy3, mask_token3,
                       pos_embed3)
    np.testing.assert_allclose(np.asarray(outb.astype(jnp.float32)), refb,
                               rtol=2e-2, atol=3e-2)

    print("KERNEL_OK")
</pallas_src>

<mosaic_0001>
module attributes {stable_mosaic.version = 11 : i64} {
  func.func @_mask_completion_kernel(%arg0: i32, %arg1: i32, %arg2: memref<4x2xi32, #tpu.memory_space<smem>>, %arg3: memref<4x2x8xf32, #tpu.memory_space<vmem>>, %arg4: memref<4x5x48xf32, #tpu.memory_space<vmem>>, %arg5: memref<1x48xf32, #tpu.memory_space<vmem>>, %arg6: memref<8x48xf32, #tpu.memory_space<vmem>>, %arg7: memref<4x8x48xf32, #tpu.memory_space<vmem>>) attributes {dimension_semantics = [#tpu.dimension_semantics<parallel>, #tpu.dimension_semantics<parallel>], iteration_bounds = array<i64: 1, 2>, scalar_prefetch = 1 : i64, scratch_operands = 0 : i64, tpu.core_type = #tpu.core_type<tc>, window_params = [{transform_indices = @transform_0, window_bounds = array<i64: 4, 2, 8>}, {transform_indices = @transform_1, window_bounds = array<i64: 4, 5, 48>}, {pipeline_mode = #tpu.pipeline_mode<synchronous>, transform_indices = @transform_2, window_bounds = array<i64: 1, 48>}, {transform_indices = @transform_3, window_bounds = array<i64: 8, 48>}, {transform_indices = @transform_4, window_bounds = array<i64: 4, 8, 48>}]} {
    %0 = tpu.iota {dimensions = array<i32: 0>} : vector<8x8xi32>
    %1 = tpu.iota {dimensions = array<i32: 1>} : vector<8x8xi32>
    %2 = arith.cmpi slt, %1, %0 : vector<8x8xi32>
    %3 = arith.extui %2 : vector<8x8xi1> to vector<8x8xi32>
    %4 = arith.sitofp %3 : vector<8x8xi32> to vector<8x8xf32>
    %5 = arith.cmpi eq, %1, %0 : vector<8x8xi32>
    %6 = arith.extui %5 : vector<8x8xi1> to vector<8x8xi32>
    %7 = arith.sitofp %6 : vector<8x8xi32> to vector<8x8xf32>
    %cst = arith.constant 1.400000e+01 : f32
    %8 = vector.broadcast %cst : f32 to vector<8x8xf32>
    %9 = arith.mulf %8, %7 : vector<8x8xf32>
    %10 = arith.addf %4, %9 : vector<8x8xf32>
    %11 = tpu.iota {dimensions = array<i32: 1>} : vector<8x5xi32>
    %c0 = arith.constant 0 : index
    %c0_0 = arith.constant 0 : index
    %12 = vector.load %arg6[%c0, %c0_0] : memref<8x48xf32, #tpu.memory_space<vmem>>, vector<8x48xf32>
    %c0_1 = arith.constant 0 : index
    %c0_2 = arith.constant 0 : index
    %13 = vector.load %arg5[%c0_1, %c0_2] : memref<1x48xf32, #tpu.memory_space<vmem>>, vector<1x48xf32>
    %c0_i32 = arith.constant 0 : i32
    %c4_i32 = arith.constant 4 : i32
    %14 = arith.addi %c0_i32, %c4_i32 : i32
    %c1_i32 = arith.constant 1 : i32
    scf.for %arg8 = %c0_i32 to %14 step %c1_i32  : i32 {
      %c4_i32_4 = arith.constant 4 : i32
      %15 = arith.muli %arg0, %c4_i32_4 : i32
      %16 = arith.addi %15, %arg8 : i32
      %17 = arith.index_cast %16 : i32 to index
      %18 = arith.index_cast %arg1 : i32 to index
      %19 = memref.load %arg2[%17, %18] : memref<4x2xi32, #tpu.memory_space<smem>>
      %c0_i32_5 = arith.constant 0 : i32
      %20 = arith.minsi %19, %c0_i32_5 : i32
      %c0_i32_6 = arith.constant 0 : i32
      %21 = arith.maxsi %20, %c0_i32_6 : i32
      %22 = arith.index_cast %arg8 : i32 to index
      %23 = arith.index_cast %arg1 : i32 to index
      %c0_7 = arith.constant 0 : index
      %24 = vector.load %arg3[%22, %23, %c0_7] : memref<4x2x8xf32, #tpu.memory_space<vmem>>, vector<1x1x8xf32>
      %25 = vector.shape_cast %24 : vector<1x1x8xf32> to vector<1x8xf32>
      %26 = vector.broadcast %25 : vector<1x8xf32> to vector<8x8xf32>
      %27 = arith.mulf %10, %26 : vector<8x8xf32>
      %cst_8 = arith.constant dense<0.000000e+00> : vector<8xf32>
      %28 = vector.multi_reduction <add>, %27, %cst_8 [1] : vector<8x8xf32> to vector<8xf32>
      %29 = vector.shape_cast %28 : vector<8xf32> to vector<8x1xf32>
      %30 = arith.subi %19, %21 : i32
      %c14_i32 = arith.constant 14 : i32
      %31 = arith.subi %30, %c14_i32 : i32
      %32 = arith.sitofp %31 : i32 to f32
      %33 = vector.broadcast %32 : f32 to vector<8x1xf32>
      %34 = arith.addf %29, %33 : vector<8x1xf32>
      %cst_9 = arith.constant 0.000000e+00 : f32
      %35 = vector.broadcast %cst_9 : f32 to vector<8x1xf32>
      %36 = arith.cmpf oge, %34, %35 : vector<8x1xf32>
      %37 = arith.extui %36 : vector<8x1xi1> to vector<8x1xi32>
      %38 = arith.sitofp %37 : vector<8x1xi32> to vector<8x1xf32>
      %39 = arith.fptosi %34 : vector<8x1xf32> to vector<8x1xi32>
      %40 = vector.broadcast %39 : vector<8x1xi32> to vector<8x5xi32>
      %41 = arith.cmpi eq, %40, %11 : vector<8x5xi32>
      %42 = arith.extui %41 : vector<8x5xi1> to vector<8x5xi32>
      %43 = arith.sitofp %42 : vector<8x5xi32> to vector<8x5xf32>
      %44 = arith.index_cast %arg8 : i32 to index
      %45 = arith.index_cast %21 : i32 to index
      %c0_10 = arith.constant 0 : index
      %46 = vector.load %arg4[%44, %45, %c0_10] : memref<4x5x48xf32, #tpu.memory_space<vmem>>, vector<1x5x48xf32>
      %47 = vector.shape_cast %46 : vector<1x5x48xf32> to vector<5x48xf32>
      %cst_11 = arith.constant dense<0.000000e+00> : vector<8x48xf32>
      %48 = tpu.matmul %43, %47, %cst_11 {dimension_numbers = #tpu.dot_dimension_numbers<[1], [0], [0], [1], [0, 0, 1, 1], [], []>, precision = #tpu.contract_precision<fp32>} : vector<8x5xf32>, vector<5x48xf32>, vector<8x48xf32> -> vector<8x48xf32>
      %cst_12 = arith.constant 1.000000e+00 : f32
      %49 = vector.broadcast %cst_12 : f32 to vector<8x1xf32>
      %50 = arith.subf %49, %38 : vector<8x1xf32>
      %51 = vector.broadcast %50 : vector<8x1xf32> to vector<8x48xf32>
      %52 = vector.broadcast %13 : vector<1x48xf32> to vector<8x48xf32>
      %53 = arith.mulf %51, %52 : vector<8x48xf32>
      %54 = arith.addf %48, %53 : vector<8x48xf32>
      %55 = arith.addf %54, %12 : vector<8x48xf32>
      %56 = arith.index_cast %arg8 : i32 to index
      %c0_13 = arith.constant 0 : index
      %c0_14 = arith.constant 0 : index
      %57 = vector.load %arg7[%56, %c0_13, %c0_14] : memref<4x8x48xf32, #tpu.memory_space<vmem>>, vector<1x8x48xf32>
      %58 = vector.shape_cast %57 : vector<1x8x48xf32> to vector<8x48xf32>
      %59 = vector.shape_cast %55 : vector<8x48xf32> to vector<1x8x48xf32>
      tpu.vector_store %arg7[%56, %c0_13, %c0_14], %59 {strides = array<i32>} : memref<4x8x48xf32, #tpu.memory_space<vmem>>, vector<1x8x48xf32>,
    }
    %c4_i32_3 = arith.constant 4 : i32
    return
  }
  func.func @transform_0(%arg0: i32, %arg1: i32, %arg2: memref<4x2xi32, #tpu.memory_space<smem>>) -> (i32, i32, i32) {
    %c0_i32 = arith.constant 0 : i32
    %c0_i32_0 = arith.constant 0 : i32
    %c0_i32_1 = arith.constant 0 : i32
    return %arg0, %c0_i32, %c0_i32_0 : i32, i32, i32
  }
  func.func @transform_1(%arg0: i32, %arg1: i32, %arg2: memref<4x2xi32, #tpu.memory_space<smem>>) -> (i32, i32, i32) {
    %c0_i32 = arith.constant 0 : i32
    %c0_i32_0 = arith.constant 0 : i32
    %c0_i32_1 = arith.constant 0 : i32
    return %arg0, %c0_i32, %c0_i32_0 : i32, i32, i32
  }
  func.func @transform_2(%arg0: i32, %arg1: i32, %arg2: memref<4x2xi32, #tpu.memory_space<smem>>) -> (i32, i32) {
    %c0_i32 = arith.constant 0 : i32
    %c0_i32_0 = arith.constant 0 : i32
    %c0_i32_1 = arith.constant 0 : i32
    return %c0_i32, %c0_i32_0 : i32, i32
  }
  func.func @transform_3(%arg0: i32, %arg1: i32, %arg2: memref<4x2xi32, #tpu.memory_space<smem>>) -> (i32, i32) {
    %c0_i32 = arith.constant 0 : i32
    %c0_i32_0 = arith.constant 0 : i32
    return %arg1, %c0_i32 : i32, i32
  }
  func.func @transform_4(%arg0: i32, %arg1: i32, %arg2: memref<4x2xi32, #tpu.memory_space<smem>>) -> (i32, i32, i32) {
    %c0_i32 = arith.constant 0 : i32
    %c0_i32_0 = arith.constant 0 : i32
    return %arg0, %arg1, %c0_i32 : i32, i32, i32
  }
}

</mosaic_0001>

<llo_original>
// kernel: tpu_custom_call.1
$region0: #{tpu_custom_call.1}
  #allocation0 [shape = 'u32[]', space=smem, size = 0x4, offset = 0x4, fixed_abs, tag = 'smem constant byte address 0x4 - core index']
  #allocation1 [shape = 'u32[144,128]{1,0:T(1,128)}', space=vmem, size = 0x12000, scoped, tag = 'internal scratch']
  #allocation2 [shape = 's32[1]{0}', space=sflag, size = 0x4, scoped, tag = 'scoped memory for tpu_custom_call.1']
  #allocation3 [shape = 'u8[2048]{0}', space=smem, size = 0x800, scoped, tag = 'prefetched SMEM operand 0']
  %s0 = inlined_call_operand.vmem [shape: s32[4,2], index: 0, kind: input, shape index: {}]
  %s1 = inlined_call_operand.vmem [shape: f32[4,2,8], index: 1, kind: input, shape index: {}]
  %s2 = inlined_call_operand.vmem [shape: f32[4,5,48], index: 2, kind: input, shape index: {}]
  %s3 = inlined_call_operand.vmem [shape: f32[1,48], index: 3, kind: input, shape index: {}]
  %s4 = inlined_call_operand.vmem [shape: f32[16,48], index: 4, kind: input, shape index: {}]
  %s5 = inlined_call_operand.vmem [shape: f32[4,9,48], index: 5, kind: output, shape index: {}]
  %s6 = sld [smem:[#allocation0]]
  $region90: #{tpu_custom_call.1} parent=0
    _
  %s8 = ssub.s32 1, %s6
  %s9 = scalar_select 0, %s8, %s6
  %s10 = sshll.u32 %s0, 4
  %s11 = int_to_ptr.vmem [resolvable:$true] %s10
  %13 = dma.vmem_to_smem %s11, 64, [#allocation3], [#allocation2]
  %14 = dma.done [#allocation2], 64
  %15 = sfence
  $region1: #{tpu_custom_call.1} parent=0
    #allocation4 [shape = 'u8[32768]{0}', space=vmem, size = 0x8000, scoped, tag = 'output window, operand 0']
    loop: start=0, step=1, limit=4
    $region2: #{tpu_custom_call.1} parent=1 // loop_pre_header
      _
    $region3: #{tpu_custom_call.1} parent=1 // loop_header
      %s17 = sphi 0, %s21
      %p18 = scmp.ge.s32.totalorder %s17, 4
      %s24 = sphi 0, %s36
      %s25 = sphi 0, %s32
      %s26 = sphi 0, %s24
      %s27 = sphi 0, %s25
      %s28 = sphi 0, %s26
      %s29 = sphi 0, %s27
      %s39 = sphi 0, %s41
      %s42 = sphi 0, %s39
      %s43 = sphi 0, %s42
      %s59 = sphi 0, %s43
      %s65 = sphi 0, %s67
      %s68 = sphi 0, %s65
      %s69 = sphi 0, %s68
      %s85 = sphi 0, %s69
      %s89 = sphi 0, %s89
      %s91 = sphi 0, %s89
      %s92 = sphi 0, %s91
      %s106 = sphi 0, %s92
      %s112 = sphi 0, %s114
      %s115 = sphi 0, %s112
      %s116 = sphi 0, %s115
      %s132 = sphi 0, %s116
      %s140 = sphi 0, %s142
      %s143 = sphi 0, %s140
      %s144 = sphi 0, %s143
      %s160 = sphi 0, %s144
    $region4: #{tpu_custom_call.1} parent=1 // loop_header_branch
      %20 = sbr.rel (%p18) target = $region8
    $region5: #{tpu_custom_call.1} parent=1 // loop_body
      %s22 = ssub.s32 %s17, 1
      %s23 = ssub.s32 %s17, 2
      %s30 = sadd.s32 1, %s25
      %p31 = scmp.ge.s32.totalorder %s30, 2
      %s32 = scalar_select %p31, 0, %s30
      %s33 = sadd.s32 1, %s24
      %s34 = scalar_select %p31, %s33, %s24
      %p35 = scmp.ge.s32.totalorder %s34, 1
      %s36 = scalar_select %p35, 0, %s34
      %s37 = ssub.s32 %s24, %s36
      %p38 = scmp.eq.s32.totalorder %s37, 0
      %s40 = sadd.s32 %s39, 1
      %s41 = scalar_select %p38, %s39, %s40
      %p44 = pneg %p38
      %p45 = scmp.eq.s32.totalorder %s17, 1
      %p46 = por %p44, %p45
      %p47 = scmp.ne.s32.totalorder %s39, %s42
      %p48 = scmp.eq.s32.totalorder %s17, 0
      %p49 = por %p47, %p48
      %p50 = scmp.ne.s32.totalorder %s39, %s42
      %p51 = scmp.eq.s32.totalorder %s22, 1
      %p52 = por %p50, %p51
      %p53 = scmp.ne.s32.totalorder %s42, %s43
      %p54 = scmp.eq.s32.totalorder %s22, 0
      %p55 = por %p53, %p54
      %p56 = scmp.ne.s32.totalorder %s42, %s43
      %p57 = scmp.eq.s32.totalorder %s23, 1
      %p58 = por %p56, %p57
      %p60 = scmp.ne.s32.totalorder %s43, %s59
      %p61 = scmp.eq.s32.totalorder %s23, 0
      %p62 = por %p60, %p61
      %s63 = ssub.s32 %s24, %s36
      %p64 = scmp.eq.s32.totalorder %s63, 0
      %s66 = sadd.s32 %s65, 1
      %s67 = scalar_select %p64, %s65, %s66
      %p70 = pneg %p64
      %p71 = scmp.eq.s32.totalorder %s17, 1
      %p72 = por %p70, %p71
      %p73 = scmp.ne.s32.totalorder %s65, %s68
      %p74 = scmp.eq.s32.totalorder %s17, 0
      %p75 = por %p73, %p74
      %p76 = scmp.ne.s32.totalorder %s65, %s68
      %p77 = scmp.eq.s32.totalorder %s22, 1
      %p78 = por %p76, %p77
      %p79 = scmp.ne.s32.totalorder %s68, %s69
      %p80 = scmp.eq.s32.totalorder %s22, 0
      %p81 = por %p79, %p80
      %p82 = scmp.ne.s32.totalorder %s68, %s69
      %p83 = scmp.eq.s32.totalorder %s23, 1
      %p84 = por %p82, %p83
      %p86 = scmp.ne.s32.totalorder %s69, %s85
      %p87 = scmp.eq.s32.totalorder %s23, 0
      %p88 = por %p86, %p87
      %s90 = sadd.s32 %s89, 1
      %p93 = scmp.eq.s32.totalorder %s17, 1
      %p94 = scmp.ne.s32.totalorder %s89, %s91
      %p95 = scmp.eq.s32.totalorder %s17, 0
      %p96 = por %p94, %p95
      %p97 = scmp.ne.s32.totalorder %s89, %s91
      %p98 = scmp.eq.s32.totalorder %s22, 1
      %p99 = por %p97, %p98
      %p100 = scmp.ne.s32.totalorder %s91, %s92
      %p101 = scmp.eq.s32.totalorder %s22, 0
      %p102 = por %p100, %p101
      %p103 = scmp.ne.s32.totalorder %s91, %s92
      %p104 = scmp.eq.s32.totalorder %s23, 1
      %p105 = por %p103, %p104
      %p107 = scmp.ne.s32.totalorder %s92, %s106
      %p108 = scmp.eq.s32.totalorder %s23, 0
      %p109 = por %p107, %p108
      %s110 = ssub.s32 %s25, %s32
      %p111 = scmp.eq.s32.totalorder %s110, 0
      %s113 = sadd.s32 %s112, 1
      %s114 = scalar_select %p111, %s112, %s113
      %p117 = pneg %p111
      %p118 = scmp.eq.s32.totalorder %s17, 1
      %p119 = por %p117, %p118
      %p120 = scmp.ne.s32.totalorder %s112, %s115
      %p121 = scmp.eq.s32.totalorder %s17, 0
      %p122 = por %p120, %p121
      %p123 = scmp.ne.s32.totalorder %s112, %s115
      %p124 = scmp.eq.s32.totalorder %s22, 1
      %p125 = por %p123, %p124
      %p126 = scmp.ne.s32.totalorder %s115, %s116
      %p127 = scmp.eq.s32.totalorder %s22, 0
      %p128 = por %p126, %p127
      %p129 = scmp.ne.s32.totalorder %s115, %s116
      %p130 = scmp.eq.s32.totalorder %s23, 1
      %p131 = por %p129, %p130
      %p133 = scmp.ne.s32.totalorder %s116, %s132
      %p134 = scmp.eq.s32.totalorder %s23, 0
      %p135 = por %p133, %p134
      %s136 = ssub.s32 %s24, %s36
      %s137 = ssub.s32 %s25, %s32
      %s138 = sor.u32 %s136, %s137
      %p139 = scmp.eq.s32.totalorder %s138, 0
      %s141 = sadd.s32 %s140, 1
      %s142 = scalar_select %p139, %s140, %s141
      %p145 = pneg %p139
      %p146 = scmp.eq.s32.totalorder %s17, 1
      %p147 = por %p145, %p146
      %p148 = scmp.ne.s32.totalorder %s140, %s143
      %p149 = scmp.eq.s32.totalorder %s17, 0
      %p150 = por %p148, %p149
      %p151 = scmp.ne.s32.totalorder %s140, %s143
      %p152 = scmp.eq.s32.totalorder %s22, 1
      %p153 = por %p151, %p152
      %p154 = scmp.ne.s32.totalorder %s143, %s144
      %p155 = scmp.eq.s32.totalorder %s22, 0
      %p156 = por %p154, %p155
      %p157 = scmp.ne.s32.totalorder %s143, %s144
      %p158 = scmp.eq.s32.totalorder %s23, 1
      %p159 = por %p157, %p158
      %p161 = scmp.ne.s32.totalorder %s144, %s160
      %p162 = scmp.eq.s32.totalorder %s23, 0
      %p163 = por %p161, %p162
      %p164 = scmp.le.s32.totalorder 1, %s17
      %p165 = scmp.lt.s32.totalorder %s17, 3
      %p166 = pnand %p164, %p165
      %p167 = pneg %p166
      // Predicated region
      $region9: #{tpu_custom_call.1} parent=5 // pred_check
        _
      $region10: #{tpu_custom_call.1} parent=5 // pred_check_branch
        %169 = sbr.rel (%p166) target = $region12
      $region11: #{tpu_custom_call.1} parent=5 // pred_region
        %s170 = ssub.s32 %s17, 1
        // Predicated region
        $region13: #{tpu_custom_call.1} parent=11 // pred_check
          %p171 = pneg %p55
        $region14: #{tpu_custom_call.1} parent=11 // pred_check_branch
          %173 = sbr.rel (%p171) target = $region16
        $region15: #{tpu_custom_call.1} parent=11 // pred_region
          %s174 = smul.u32 4, %s26
          %p175 = scmp.lt.s32.totalorder %s174, 3
          %s176 = scalar_select %p175, %s174, 3
          %s177 = smul.addr %s176, 2
          %s178 = scalar_lea.vmem %s1, %s177
          %s179 = smul.u32 4, %s26
        $region16: #{tpu_custom_call.1} parent=11 // pred_fallthru
          _
        // Predicated region
        $region17: #{tpu_custom_call.1} parent=11 // pred_check
          %p180 = pneg %p81
        $region18: #{tpu_custom_call.1} parent=11 // pred_check_branch
          %182 = sbr.rel (%p180) target = $region20
        $region19: #{tpu_custom_call.1} parent=11 // pred_region
          %s183 = smul.u32 4, %s26
          %p184 = scmp.lt.s32.totalorder %s183, 3
          %s185 = scalar_select %p184, %s183, 3
          %s186 = smul.addr %s185, 8
          %s187 = scalar_lea.vmem %s2, %s186
          %s188 = smul.u32 4, %s26
        $region20: #{tpu_custom_call.1} parent=11 // pred_fallthru
          _
        // Predicated region
        $region21: #{tpu_custom_call.1} parent=11 // pred_check
          %p189 = pneg %p102
        $region22: #{tpu_custom_call.1} parent=11 // pred_check_branch
          %191 = sbr.rel (%p189) target = $region24
        $region23: #{tpu_custom_call.1} parent=11 // pred_region
          _
        $region24: #{tpu_custom_call.1} parent=11 // pred_fallthru
          _
      $region12: #{tpu_custom_call.1} parent=5 // pred_fallthru
        _
      %p192 = scmp.lt.s32.totalorder %s17, 2
      // Predicated region
      $region25: #{tpu_custom_call.1} parent=5 // pred_check
        %p193 = pneg %p192
      $region26: #{tpu_custom_call.1} parent=5 // pred_check_branch
        %195 = sbr.rel (%p193) target = $region28
      $region27: #{tpu_custom_call.1} parent=5 // pred_region
        // Predicated region
        $region29: #{tpu_custom_call.1} parent=27 // pred_check
          %p196 = pneg %p122
        $region30: #{tpu_custom_call.1} parent=27 // pred_check_branch
          %198 = sbr.rel (%p196) target = $region32
        $region31: #{tpu_custom_call.1} parent=27 // pred_region
          %p199 = scmp.lt.s32.totalorder %s25, 1
          %s200 = scalar_select %p199, %s25, 1
          %s201 = smul.addr %s200, 8
          %s202 = scalar_lea.vmem %s4, %s201
        $region32: #{tpu_custom_call.1} parent=27 // pred_fallthru
          _
      $region28: #{tpu_custom_call.1} parent=5 // pred_fallthru
        _
      %p203 = scmp.le.s32.totalorder 1, %s17
      %p204 = scmp.lt.s32.totalorder %s17, 3
      %p205 = pnand %p203, %p204
      %p206 = pneg %p205
      // Predicated region
      $region33: #{tpu_custom_call.1} parent=5 // pred_check
        _
      $region34: #{tpu_custom_call.1} parent=5 // pred_check_branch
        %208 = sbr.rel (%p205) target = $region36
      $region35: #{tpu_custom_call.1} parent=5 // pred_region
        %s209 = ssub.s32 %s17, 1
        %s210 = smul.u32 4, %s26
        %p211 = scmp.lt.s32.totalorder %s210, 3
        %s212 = scalar_select %p211, %s210, 3
        %s213 = smul.addr %s212, 2
        %s214 = scalar_lea.vmem %s1, %s213
        %p215 = pneg %p55
        %p216 = pneg %p52
        %s217 = smul.u32 4, %s26
        %p218 = scmp.lt.s32.totalorder %s217, 3
        %s219 = scalar_select %p218, %s217, 3
        %s220 = smul.addr %s219, 8
        %s221 = scalar_lea.vmem %s2, %s220
        %p222 = pneg %p81
        %p223 = pneg %p78
        %p224 = pneg %p102
        %p225 = pneg %p99
        %p226 = scmp.lt.s32.totalorder %s27, 1
        %s227 = scalar_select %p226, %s27, 1
        %s228 = smul.addr %s227, 8
        %s229 = scalar_lea.vmem %s4, %s228
        %p230 = pneg %p128
        %p231 = pneg %p125
        %p232 = pneg %p156
        %p233 = pneg %p153
        %s234 = sand.u32 %s143, 1
        %s235 = sand.u32 %s143, 1
        %s236 = smul.addr %s235, 32
        %s237 = scalar_lea.vmem [#allocation4], %s236
        %s238 = smul.u32 4, %s26
        %p239 = scmp.lt.s32.totalorder %s238, 3
        %s240 = scalar_select %p239, %s238, 3
        %s241 = smul.addr %s240, 2
        %s242 = scalar_lea.vmem %s1, %s241
        %s243 = smul.u32 4, %s26
        %s244 = smul.u32 4, %s26
        %p245 = scmp.lt.s32.totalorder %s244, 3
        %s246 = scalar_select %p245, %s244, 3
        %s247 = smul.addr %s246, 8
        %s248 = scalar_lea.vmem %s2, %s247
        %s249 = smul.u32 4, %s26
        %p250 = scmp.lt.s32.totalorder %s27, 1
        %s251 = scalar_select %p250, %s27, 1
        %s252 = smul.addr %s251, 8
        %s253 = scalar_lea.vmem %s4, %s252
        %s254 = smul.u32 4, %s26
        %v255 = vlaneseq
        %v256 = vshrl.u32 %v255, 7
        %v257 = vlaneseq
        %v258 = vand.u32 %v257, 127
        %vm259 = vcmp.lt.s32.totalorder %v258, %v256
        %v260 = vsel %vm259, 1, 0
        %v261 = vcvt.s32.f32 %v260
        %vm262 = vcmp.eq.s32.totalorder %v258, %v256
        %v263 = vsel %vm262, 1, 0
        %v264 = vcvt.s32.f32 %v263
        %v265 = vmul.f32 %v264, 14.0
        %v266 = vadd.f32 %v261, %v265
        %v267 = vld [vmem:[%s253] sm:$0xff]
        %v268 = vld [vmem:[%s3] sm:$0x1]
        loop: start=0, step=1, limit=4
        $region37: #{tpu_custom_call.1} parent=35 // loop_pre_header
          _
        $region38: #{tpu_custom_call.1} parent=35 // loop_header
          %s270 = sphi 0, %s274
          %p271 = scmp.ge.s32.totalorder %s270, 4
        $region39: #{tpu_custom_call.1} parent=35 // loop_header_branch
          %273 = sbr.rel (%p271) target = $region43
        $region40: #{tpu_custom_call.1} parent=35 // loop_body
          %s275 = smul.u32 %s26, 4
          %s276 = sadd.s32 %s275, %s270
          %s277 = sshra.s32 %s27, 7
          %s278 = sand.u32 %s27, 127
          %s279 = sadd.s32 %s277, %s276
          %s280 = smul.u32 %s279, 128
          %s281 = sshra.s32 %s27, 7
          %s282 = sand.u32 %s27, 127
          %s283 = sadd.s32 %s280, %s282
          %s284 = sld [smem:[#allocation3 + %s283]]
          %p285 = scmp.lt.s32.totalorder %s284, 0
          %s286 = scalar_select %p285, %s284, 0
          %p287 = scmp.gt.s32.totalorder %s286, 0
          %s288 = scalar_select %p287, %s286, 0
          %s289 = smul.u32 %s270, 2
          %s290 = sadd.s32 %s27, %s289
          %s291 = scalar_lea.vmem %s242, %s290
          %v292 = vld [vmem:[%s291] sm:$0x1]
          %v293 = vlaneseq
          %v294 = vshrl.u32 %v293, 7
          %v295 = vsub.s32 0, %v294
          %v296 = vrot.slane %v292, %v295
          %v297 = vmul.f32 %v266, %v296
          %vm298 = vcmask 64512
          %v299 = vsel %vm298, %v297, 0.0
          %300 = vadd.xlane.f32.xlu0 %v299
          %v301 = vpop.xlane.xlu0 %300
          %s302 = ssub.s32 %s284, %s288
          %s303 = ssub.s32 %s302, 14
          %s304 = scvt.s32.f32 %s303
          %v305 = vstv %s304
          %v306 = vadd.f32 %v301, %v305
          %vm307 = vcmp.ge.f32.partialorder %v306, 0.0
          %v308 = vsel %vm307, 1, 0
          %v309 = vcvt.s32.f32 %v308
          %v310 = vcvt.f32.s32.to.zero.pseudo %v306
          %vm311 = vcmp.eq.s32.totalorder %v310, %v258
          %v312 = vsel %vm311, 1, 0
          %v313 = vcvt.s32.f32 %v312
          %s314 = smul.u32 %s270, 8
          %s315 = sadd.s32 %s288, %s314
          %s316 = scalar_lea.vmem %s248, %s315
          %v317 = vld [vmem:[%s316] sm:$0x1f]
          %v318 = vsub.f32 1.0, %v309
          %v320 = vlaneseq
          %v321 = vshrl.u32 %v320, 7
          %v322 = vsub.s32 0, %v321
          %v323 = vrot.slane %v268, %v322
          %v325 = vmul.f32 %v318, %v323
          %vm326 = vcmask 39936
          %v328 = vsel %vm326, %v313, 0
          %vm330 = vcmask 1044480
          %v332 = vsel %vm330, %v317, 0
          %334 = vmatprep.subr.mxu0 0.0
          %v335 = vand.u32 %v332, 4294901760
          %336 = vmatpush1.msra.mxu0 %v335
          %337 = vmatprep.subr.mxu0 0.0
          %338 = vmatpush1.msra.mxu0 0.0
          %339 = vmatprep.subr.mxu0 0.0
          %340 = vmatpush1.msra.mxu0 0.0
          %341 = vmatprep.subr.mxu0 0.0
          %342 = vmatpush1.msra.mxu0 0.0
          %343 = vmatprep.subr.mxu0 0.0
          %344 = vmatpush1.msra.mxu0 0.0
          %345 = vmatprep.subr.mxu0 0.0
          %346 = vmatpush1.msra.mxu0 0.0
          %347 = vmatprep.subr.mxu0 0.0
          %348 = vmatpush1.msra.mxu0 0.0
          %349 = vmatprep.subr.mxu0 0.0
          %350 = vmatpush1.msra.mxu0 0.0
          %351 = vmatprep.subr.mxu0 0.0
          %352 = vmatpush1.msra.mxu0 0.0
          %353 = vmatprep.subr.mxu0 0.0
          %354 = vmatpush1.msra.mxu0 0.0
          %355 = vmatprep.subr.mxu0 0.0
          %356 = vmatpush1.msra.mxu0 0.0
          %357 = vmatprep.subr.mxu0 0.0
          %358 = vmatpush1.msra.mxu0 0.0
          %359 = vmatprep.subr.mxu0 0.0
          %360 = vmatpush1.msra.mxu0 0.0
          %361 = vmatprep.subr.mxu0 0.0
          %362 = vmatpush1.msra.mxu0 0.0
          %363 = vmatprep.subr.mxu0 0.0
          %364 = vmatpush1.msra.mxu0 0.0
          %365 = vmatprep.subr.mxu0 0.0
          %366 = vmatpush1.msra.mxu0 0.0
          %367 = vmatprep.subr.mxu0 0.0
          %368 = vmatpush1.msra.mxu0 0.0
          %369 = vmatprep.subr.mxu0 0.0
          %370 = vmatpush1.msra.mxu0 0.0
          %371 = vmatprep.subr.mxu0 0.0
          %372 = vmatpush1.msra.mxu0 0.0
          %373 = vmatprep.subr.mxu0 0.0
          %374 = vmatpush1.msra.mxu0 0.0
          %375 = vmatprep.subr.mxu0 0.0
          %376 = vmatpush1.msra.mxu0 0.0
          %377 = vmatprep.subr.mxu0 0.0
          %378 = vmatpush1.msra.mxu0 0.0
          %379 = vmatprep.subr.mxu0 0.0
          %380 = vmatpush1.msra.mxu0 0.0
          %381 = vmatprep.subr.mxu0 0.0
          %382 = vmatpush1.msra.mxu0 0.0
          %383 = vmatprep.subr.mxu0 0.0
          %384 = vmatpush1.msra.mxu0 0.0
          %385 = vmatprep.subr.mxu0 0.0
          %386 = vmatpush1.msra.mxu0 0.0
          %387 = vmatprep.subr.mxu0 0.0
          %388 = vmatpush1.msra.mxu0 0.0
          %389 = vmatprep.subr.mxu0 0.0
          %390 = vmatpush1.msra.mxu0 0.0
          %391 = vmatprep.subr.mxu0 0.0
          %392 = vmatpush1.msra.mxu0 0.0
          %393 = vmatprep.subr.mxu0 0.0
          %394 = vmatpush1.msra.mxu0 0.0
          %395 = vmatprep.subr.mxu0 0.0
          %396 = vmatpush1.msra.mxu0 0.0
          %397 = vmatprep.subr.mxu0 0.0
          %398 = vmatpush1.msra.mxu0 0.0
          %399 = vmatprep.mubr.f32.mxu0 0.0
          %v400 = vand.u32 %v328, 4294901760
          %v401 = vsub.f32 %v328, %v400
          %v402 = vand.u32 %v401, 4294901760
          %v403 = vsub.f32 %v401, %v402
          %v404 = vand.u32 %v403, 4294901760
          %405 = vmatmul.mubr.f32.gmra.mrb[0].mxu0 %v404
          %v406 = vpop.f32.mrb[0].mxu0
          %v407 = vadd.f32 %v325, %v406
          %v408 = vpop.f32.mrb[0].mxu0
          %409 = vdwg.mxu0
          %410 = vmatprep.subr.mxu0 0.0
          %v411 = vand.u32 %v332, 4294901760
          %v412 = vsub.f32 %v332, %v411
          %v413 = vand.u32 %v412, 4294901760
          %v414 = vsub.f32 %v412, %v413
          %v415 = vand.u32 %v414, 4294901760
          %416 = vmatpush1.msra.mxu0 %v415
          %417 = vmatprep.subr.mxu0 0.0
          %418 = vmatpush1.msra.mxu0 0.0
          %419 = vmatprep.subr.mxu0 0.0
          %420 = vmatpush1.msra.mxu0 0.0
          %421 = vmatprep.subr.mxu0 0.0
          %422 = vmatpush1.msra.mxu0 0.0
          %423 = vmatprep.subr.mxu0 0.0
          %424 = vmatpush1.msra.mxu0 0.0
          %425 = vmatprep.subr.mxu0 0.0
          %426 = vmatpush1.msra.mxu0 0.0
          %427 = vmatprep.subr.mxu0 0.0
          %428 = vmatpush1.msra.mxu0 0.0
          %429 = vmatprep.subr.mxu0 0.0
          %430 = vmatpush1.msra.mxu0 0.0
          %431 = vmatprep.subr.mxu0 0.0
          %432 = vmatpush1.msra.mxu0 0.0
          %433 = vmatprep.subr.mxu0 0.0
          %434 = vmatpush1.msra.mxu0 0.0
          %435 = vmatprep.subr.mxu0 0.0
          %436 = vmatpush1.msra.mxu0 0.0
          %437 = vmatprep.subr.mxu0 0.0
          %438 = vmatpush1.msra.mxu0 0.0
          %439 = vmatprep.subr.mxu0 0.0
          %440 = vmatpush1.msra.mxu0 0.0
          %441 = vmatprep.subr.mxu0 0.0
          %442 = vmatpush1.msra.mxu0 0.0
          %443 = vmatprep.subr.mxu0 0.0
          %444 = vmatpush1.msra.mxu0 0.0
          %445 = vmatprep.subr.mxu0 0.0
          %446 = vmatpush1.msra.mxu0 0.0
          %447 = vmatprep.subr.mxu0 0.0
          %448 = vmatpush1.msra.mxu0 0.0
          %449 = vmatprep.subr.mxu0 0.0
          %450 = vmatpush1.msra.mxu0 0.0
          %451 = vmatprep.subr.mxu0 0.0
          %452 = vmatpush1.msra.mxu0 0.0
          %453 = vmatprep.subr.mxu0 0.0
          %454 = vmatpush1.msra.mxu0 0.0
          %455 = vmatprep.subr.mxu0 0.0
          %456 = vmatpush1.msra.mxu0 0.0
          %457 = vmatprep.subr.mxu0 0.0
          %458 = vmatpush1.msra.mxu0 0.0
          %459 = vmatprep.subr.mxu0 0.0
          %460 = vmatpush1.msra.mxu0 0.0
          %461 = vmatprep.subr.mxu0 0.0
          %462 = vmatpush1.msra.mxu0 0.0
          %463 = vmatprep.subr.mxu0 0.0
          %464 = vmatpush1.msra.mxu0 0.0
          %465 = vmatprep.subr.mxu0 0.0
          %466 = vmatpush1.msra.mxu0 0.0
          %467 = vmatprep.subr.mxu0 0.0
          %468 = vmatpush1.msra.mxu0 0.0
          %469 = vmatprep.subr.mxu0 0.0
          %470 = vmatpush1.msra.mxu0 0.0
          %471 = vmatprep.subr.mxu0 0.0
          %472 = vmatpush1.msra.mxu0 0.0
          %473 = vmatprep.subr.mxu0 0.0
          %474 = vmatpush1.msra.mxu0 0.0
          %475 = vmatprep.subr.mxu0 0.0
          %476 = vmatpush1.msra.mxu0 0.0
          %477 = vmatprep.subr.mxu0 0.0
          %478 = vmatpush1.msra.mxu0 0.0
          %479 = vmatprep.mubr.f32.mxu0 0.0
          %v480 = vand.u32 %v328, 4294901760
          %481 = vmatmul.mubr.f32.gmra.mrb[0].mxu0 %v480
          %v482 = vpop.f32.mrb[0].mxu0
          %v483 = vadd.f32 %v407, %v482
          %v484 = vpop.f32.mrb[0].mxu0
          %485 = vdwg.mxu0
          %486 = vmatprep.subr.mxu0 0.0
          %v487 = vand.u32 %v332, 4294901760
          %v488 = vsub.f32 %v332, %v487
          %489 = vmatpush1.msra.mxu0 %v488
          %490 = vmatprep.subr.mxu0 0.0
          %491 = vmatpush1.msra.mxu0 0.0
          %492 = vmatprep.subr.mxu0 0.0
          %493 = vmatpush1.msra.mxu0 0.0
          %494 = vmatprep.subr.mxu0 0.0
          %495 = vmatpush1.msra.mxu0 0.0
          %496 = vmatprep.subr.mxu0 0.0
          %497 = vmatpush1.msra.mxu0 0.0
          %498 = vmatprep.subr.mxu0 0.0
          %499 = vmatpush1.msra.mxu0 0.0
          %500 = vmatprep.subr.mxu0 0.0
          %501 = vmatpush1.msra.mxu0 0.0
          %502 = vmatprep.subr.mxu0 0.0
          %503 = vmatpush1.msra.mxu0 0.0
          %504 = vmatprep.subr.mxu0 0.0
          %505 = vmatpush1.msra.mxu0 0.0
          %506 = vmatprep.subr.mxu0 0.0
          %507 = vmatpush1.msra.mxu0 0.0
          %508 = vmatprep.subr.mxu0 0.0
          %509 = vmatpush1.msra.mxu0 0.0
          %510 = vmatprep.subr.mxu0 0.0
          %511 = vmatpush1.msra.mxu0 0.0
          %512 = vmatprep.subr.mxu0 0.0
          %513 = vmatpush1.msra.mxu0 0.0
          %514 = vmatprep.subr.mxu0 0.0
          %515 = vmatpush1.msra.mxu0 0.0
          %516 = vmatprep.subr.mxu0 0.0
          %517 = vmatpush1.msra.mxu0 0.0
          %518 = vmatprep.subr.mxu0 0.0
          %519 = vmatpush1.msra.mxu0 0.0
          %520 = vmatprep.subr.mxu0 0.0
          %521 = vmatpush1.msra.mxu0 0.0
          %522 = vmatprep.subr.mxu0 0.0
          %523 = vmatpush1.msra.mxu0 0.0
          %524 = vmatprep.subr.mxu0 0.0
          %525 = vmatpush1.msra.mxu0 0.0
          %526 = vmatprep.subr.mxu0 0.0
          %527 = vmatpush1.msra.mxu0 0.0
          %528 = vmatprep.subr.mxu0 0.0
          %529 = vmatpush1.msra.mxu0 0.0
          %530 = vmatprep.subr.mxu0 0.0
          %531 = vmatpush1.msra.mxu0 0.0
          %532 = vmatprep.subr.mxu0 0.0
          %533 = vmatpush1.msra.mxu0 0.0
          %534 = vmatprep.subr.mxu0 0.0
          %535 = vmatpush1.msra.mxu0 0.0
          %536 = vmatprep.subr.mxu0 0.0
          %537 = vmatpush1.msra.mxu0 0.0
          %538 = vmatprep.subr.mxu0 0.0
          %539 = vmatpush1.msra.mxu0 0.0
          %540 = vmatprep.subr.mxu0 0.0
          %541 = vmatpush1.msra.mxu0 0.0
          %542 = vmatprep.subr.mxu0 0.0
          %543 = vmatpush1.msra.mxu0 0.0
          %544 = vmatprep.subr.mxu0 0.0
          %545 = vmatpush1.msra.mxu0 0.0
          %546 = vmatprep.subr.mxu0 0.0
          %547 = vmatpush1.msra.mxu0 0.0
          %548 = vmatprep.subr.mxu0 0.0
          %549 = vmatpush1.msra.mxu0 0.0
          %550 = vmatprep.subr.mxu0 0.0
          %551 = vmatpush1.msra.mxu0 0.0
          %552 = vmatprep.mubr.f32.mxu0 0.0
          %v553 = vand.u32 %v328, 4294901760
          %v554 = vsub.f32 %v328, %v553
          %555 = vmatmul.mubr.f32.gmra.mrb[0].mxu0 %v554
          %v556 = vpop.f32.mrb[0].mxu0
          %v557 = vadd.f32 %v483, %v556
          %v558 = vpop.f32.mrb[0].mxu0
          %559 = vdwg.mxu0
          %560 = vmatprep.subr.mxu0 0.0
          %v561 = vand.u32 %v332, 4294901760
          %562 = vmatpush1.msra.mxu0 %v561
          %563 = vmatprep.subr.mxu0 0.0
          %564 = vmatpush1.msra.mxu0 0.0
          %565 = vmatprep.subr.mxu0 0.0
          %566 = vmatpush1.msra.mxu0 0.0
          %567 = vmatprep.subr.mxu0 0.0
          %568 = vmatpush1.msra.mxu0 0.0
          %569 = vmatprep.subr.mxu0 0.0
          %570 = vmatpush1.msra.mxu0 0.0
          %571 = vmatprep.subr.mxu0 0.0
          %572 = vmatpush1.msra.mxu0 0.0
          %573 = vmatprep.subr.mxu0 0.0
          %574 = vmatpush1.msra.mxu0 0.0
          %575 = vmatprep.subr.mxu0 0.0
          %576 = vmatpush1.msra.mxu0 0.0
          %577 = vmatprep.subr.mxu0 0.0
          %578 = vmatpush1.msra.mxu0 0.0
          %579 = vmatprep.subr.mxu0 0.0
          %580 = vmatpush1.msra.mxu0 0.0
          %581 = vmatprep.subr.mxu0 0.0
          %582 = vmatpush1.msra.mxu0 0.0
          %583 = vmatprep.subr.mxu0 0.0
          %584 = vmatpush1.msra.mxu0 0.0
          %585 = vmatprep.subr.mxu0 0.0
          %586 = vmatpush1.msra.mxu0 0.0
          %587 = vmatprep.subr.mxu0 0.0
          %588 = vmatpush1.msra.mxu0 0.0
          %589 = vmatprep.subr.mxu0 0.0
          %590 = vmatpush1.msra.mxu0 0.0
          %591 = vmatprep.subr.mxu0 0.0
          %592 = vmatpush1.msra.mxu0 0.0
          %593 = vmatprep.subr.mxu0 0.0
          %594 = vmatpush1.msra.mxu0 0.0
          %595 = vmatprep.subr.mxu0 0.0
          %596 = vmatpush1.msra.mxu0 0.0
          %597 = vmatprep.subr.mxu0 0.0
          %598 = vmatpush1.msra.mxu0 0.0
          %599 = vmatprep.subr.mxu0 0.0
          %600 = vmatpush1.msra.mxu0 0.0
          %601 = vmatprep.subr.mxu0 0.0
          %602 = vmatpush1.msra.mxu0 0.0
          %603 = vmatprep.subr.mxu0 0.0
          %604 = vmatpush1.msra.mxu0 0.0
          %605 = vmatprep.subr.mxu0 0.0
          %606 = vmatpush1.msra.mxu0 0.0
          %607 = vmatprep.subr.mxu0 0.0
          %608 = vmatpush1.msra.mxu0 0.0
          %609 = vmatprep.subr.mxu0 0.0
          %610 = vmatpush1.msra.mxu0 0.0
          %611 = vmatprep.subr.mxu0 0.0
          %612 = vmatpush1.msra.mxu0 0.0
          %613 = vmatprep.subr.mxu0 0.0
          %614 = vmatpush1.msra.mxu0 0.0
          %615 = vmatprep.subr.mxu0 0.0
          %616 = vmatpush1.msra.mxu0 0.0
          %617 = vmatprep.subr.mxu0 0.0
          %618 = vmatpush1.msra.mxu0 0.0
          %619 = vmatprep.subr.mxu0 0.0
          %620 = vmatpush1.msra.mxu0 0.0
          %621 = vmatprep.subr.mxu0 0.0
          %622 = vmatpush1.msra.mxu0 0.0
          %623 = vmatprep.subr.mxu0 0.0
          %624 = vmatpush1.msra.mxu0 0.0
          %625 = vmatprep.mubr.f32.mxu0 0.0
          %v626 = vand.u32 %v328, 4294901760
          %v627 = vsub.f32 %v328, %v626
          %v628 = vand.u32 %v627, 4294901760
          %629 = vmatmul.mubr.f32.gmra.mrb[0].mxu0 %v628
          %v630 = vpop.f32.mrb[0].mxu0
          %v631 = vadd.f32 %v557, %v630
          %v632 = vpop.f32.mrb[0].mxu0
          %633 = vdwg.mxu0
          %634 = vmatprep.subr.mxu0 0.0
          %v635 = vand.u32 %v332, 4294901760
          %v636 = vsub.f32 %v332, %v635
          %v637 = vand.u32 %v636, 4294901760
          %638 = vmatpush1.msra.mxu0 %v637
          %639 = vmatprep.subr.mxu0 0.0
          %640 = vmatpush1.msra.mxu0 0.0
          %641 = vmatprep.subr.mxu0 0.0
          %642 = vmatpush1.msra.mxu0 0.0
          %643 = vmatprep.subr.mxu0 0.0
          %644 = vmatpush1.msra.mxu0 0.0
          %645 = vmatprep.subr.mxu0 0.0
          %646 = vmatpush1.msra.mxu0 0.0
          %647 = vmatprep.subr.mxu0 0.0
          %648 = vmatpush1.msra.mxu0 0.0
          %649 = vmatprep.subr.mxu0 0.0
          %650 = vmatpush1.msra.mxu0 0.0
          %651 = vmatprep.subr.mxu0 0.0
          %652 = vmatpush1.msra.mxu0 0.0
          %653 = vmatprep.subr.mxu0 0.0
          %654 = vmatpush1.msra.mxu0 0.0
          %655 = vmatprep.subr.mxu0 0.0
          %656 = vmatpush1.msra.mxu0 0.0
          %657 = vmatprep.subr.mxu0 0.0
          %658 = vmatpush1.msra.mxu0 0.0
          %659 = vmatprep.subr.mxu0 0.0
          %660 = vmatpush1.msra.mxu0 0.0
          %661 = vmatprep.subr.mxu0 0.0
          %662 = vmatpush1.msra.mxu0 0.0
          %663 = vmatprep.subr.mxu0 0.0
          %664 = vmatpush1.msra.mxu0 0.0
          %665 = vmatprep.subr.mxu0 0.0
          %666 = vmatpush1.msra.mxu0 0.0
          %667 = vmatprep.subr.mxu0 0.0
          %668 = vmatpush1.msra.mxu0 0.0
          %669 = vmatprep.subr.mxu0 0.0
          %670 = vmatpush1.msra.mxu0 0.0
          %671 = vmatprep.subr.mxu0 0.0
          %672 = vmatpush1.msra.mxu0 0.0
          %673 = vmatprep.subr.mxu0 0.0
          %674 = vmatpush1.msra.mxu0 0.0
          %675 = vmatprep.subr.mxu0 0.0
          %676 = vmatpush1.msra.mxu0 0.0
          %677 = vmatprep.subr.mxu0 0.0
          %678 = vmatpush1.msra.mxu0 0.0
          %679 = vmatprep.subr.mxu0 0.0
          %680 = vmatpush1.msra.mxu0 0.0
          %681 = vmatprep.subr.mxu0 0.0
          %682 = vmatpush1.msra.mxu0 0.0
          %683 = vmatprep.subr.mxu0 0.0
          %684 = vmatpush1.msra.mxu0 0.0
          %685 = vmatprep.subr.mxu0 0.0
          %686 = vmatpush1.msra.mxu0 0.0
          %687 = vmatprep.subr.mxu0 0.0
          %688 = vmatpush1.msra.mxu0 0.0
          %689 = vmatprep.subr.mxu0 0.0
          %690 = vmatpush1.msra.mxu0 0.0
          %691 = vmatprep.subr.mxu0 0.0
          %692 = vmatpush1.msra.mxu0 0.0
          %693 = vmatprep.subr.mxu0 0.0
          %694 = vmatpush1.msra.mxu0 0.0
          %695 = vmatprep.subr.mxu0 0.0
          %696 = vmatpush1.msra.mxu0 0.0
          %697 = vmatprep.subr.mxu0 0.0
          %698 = vmatpush1.msra.mxu0 0.0
          %699 = vmatprep.subr.mxu0 0.0
          %700 = vmatpush1.msra.mxu0 0.0
          %701 = vmatprep.mubr.f32.mxu0 0.0
          %v702 = vand.u32 %v328, 4294901760
          %703 = vmatmul.mubr.f32.gmra.mrb[0].mxu0 %v702
          %v704 = vpop.f32.mrb[0].mxu0
          %v705 = vadd.f32 %v631, %v704
          %v706 = vpop.f32.mrb[0].mxu0
          %707 = vdwg.mxu0
          %708 = vmatprep.subr.mxu0 0.0
          %v709 = vand.u32 %v332, 4294901760
          %710 = vmatpush1.msra.mxu0 %v709
          %711 = vmatprep.subr.mxu0 0.0
          %712 = vmatpush1.msra.mxu0 0.0
          %713 = vmatprep.subr.mxu0 0.0
          %714 = vmatpush1.msra.mxu0 0.0
          %715 = vmatprep.subr.mxu0 0.0
          %716 = vmatpush1.msra.mxu0 0.0
          %717 = vmatprep.subr.mxu0 0.0
          %718 = vmatpush1.msra.mxu0 0.0
          %719 = vmatprep.subr.mxu0 0.0
          %720 = vmatpush1.msra.mxu0 0.0
          %721 = vmatprep.subr.mxu0 0.0
          %722 = vmatpush1.msra.mxu0 0.0
          %723 = vmatprep.subr.mxu0 0.0
          %724 = vmatpush1.msra.mxu0 0.0
          %725 = vmatprep.subr.mxu0 0.0
          %726 = vmatpush1.msra.mxu0 0.0
          %727 = vmatprep.subr.mxu0 0.0
          %728 = vmatpush1.msra.mxu0 0.0
          %729 = vmatprep.subr.mxu0 0.0
          %730 = vmatpush1.msra.mxu0 0.0
          %731 = vmatprep.subr.mxu0 0.0
          %732 = vmatpush1.msra.mxu0 0.0
          %733 = vmatprep.subr.mxu0 0.0
          %734 = vmatpush1.msra.mxu0 0.0
          %735 = vmatprep.subr.mxu0 0.0
          %736 = vmatpush1.msra.mxu0 0.0
          %737 = vmatprep.subr.mxu0 0.0
          %738 = vmatpush1.msra.mxu0 0.0
          %739 = vmatprep.subr.mxu0 0.0
          %740 = vmatpush1.msra.mxu0 0.0
          %741 = vmatprep.subr.mxu0 0.0
          %742 = vmatpush1.msra.mxu0 0.0
          %743 = vmatprep.subr.mxu0 0.0
          %744 = vmatpush1.msra.mxu0 0.0
          %745 = vmatprep.subr.mxu0 0.0
          %746 = vmatpush1.msra.mxu0 0.0
          %747 = vmatprep.subr.mxu0 0.0
          %748 = vmatpush1.msra.mxu0 0.0
          %749 = vmatprep.subr.mxu0 0.0
          %750 = vmatpush1.msra.mxu0 0.0
          %751 = vmatprep.subr.mxu0 0.0
          %752 = vmatpush1.msra.mxu0 0.0
          %753 = vmatprep.subr.mxu0 0.0
          %754 = vmatpush1.msra.mxu0 0.0
          %755 = vmatprep.subr.mxu0 0.0
          %756 = vmatpush1.msra.mxu0 0.0
          %757 = vmatprep.subr.mxu0 0.0
          %758 = vmatpush1.msra.mxu0 0.0
          %759 = vmatprep.subr.mxu0 0.0
          %760 = vmatpush1.msra.mxu0 0.0
          %761 = vmatprep.subr.mxu0 0.0
          %762 = vmatpush1.msra.mxu0 0.0
          %763 = vmatprep.subr.mxu0 0.0
          %764 = vmatpush1.msra.mxu0 0.0
          %765 = vmatprep.subr.mxu0 0.0
          %766 = vmatpush1.msra.mxu0 0.0
          %767 = vmatprep.subr.mxu0 0.0
          %768 = vmatpush1.msra.mxu0 0.0
          %769 = vmatprep.subr.mxu0 0.0
          %770 = vmatpush1.msra.mxu0 0.0
          %771 = vmatprep.subr.mxu0 0.0
          %772 = vmatpush1.msra.mxu0 0.0
          %773 = vmatprep.mubr.f32.mxu0 0.0
          %v774 = vand.u32 %v328, 4294901760
          %775 = vmatmul.mubr.f32.gmra.mrb[0].mxu0 %v774
          %v776 = vpop.f32.mrb[0].mxu0
          %v777 = vadd.f32 %v705, %v776
          %v778 = vpop.f32.mrb[0].mxu0
          %779 = vdwg.mxu0
          %v780 = vadd.f32 %v777, %v267
          %s781 = scalar_lea.vmem %s237, %s314 [#allocation4]
          %vm782 = vcmask 392192
          %783 = vst.msk [vmem:[%s781] sm:$0xff] %vm782, %v780
        $region41: #{tpu_custom_call.1} parent=35 // loop_footer
          %s274 = sadd.s32 1, %s270
        $region42: #{tpu_custom_call.1} parent=35 // loop_footer_branch
          %269 = sbr.rel target = $region38
        $region43: #{tpu_custom_call.1} parent=35 // loop_exit
          _
        %s784 = sand.u32 %s143, 1
        %s785 = sand.u32 %s143, 1
        %s786 = smul.addr %s785, 32
        %s787 = scalar_lea.vmem [#allocation4], %s786
        // Predicated region
        $region44: #{tpu_custom_call.1} parent=35 // pred_check
          %p788 = pneg %p153
        $region45: #{tpu_custom_call.1} parent=35 // pred_check_branch
          %790 = sbr.rel (%p788) target = $region47
        $region46: #{tpu_custom_call.1} parent=35 // pred_region
          %s791 = smul.u32 4, %s26
          %s792 = smul.addr %s791, 2
          %s793 = sadd.s32 %s27, %s792
          %s794 = smul.addr %s793, 8
          %s795 = scalar_lea.vmem %s5, %s794
          // Predicated region
          $region48: #{tpu_custom_call.1} parent=46 // pred_check
            _
          $region49: #{tpu_custom_call.1} parent=46 // pred_check_branch
            %797 = sbr.rel (0) target = $region51
          $region50: #{tpu_custom_call.1} parent=46 // pred_region
            // Predicated region
            $region52: #{tpu_custom_call.1} parent=50 // pred_check
              _
            $region53: #{tpu_custom_call.1} parent=50 // pred_check_branch
              %799 = sbr.rel (0) target = $region55
            $region54: #{tpu_custom_call.1} parent=50 // pred_region
              // Predicated region
              $region67: #{tpu_custom_call.1} parent=54 // pred_check
                _
              $region68: #{tpu_custom_call.1} parent=54 // pred_check_branch
                %820 = sbr.rel (0) target = $region70
              $region69: #{tpu_custom_call.1} parent=54 // pred_region
                loop: start=0, step=1, limit=1
                $region71: #{tpu_custom_call.1} parent=69 // loop_pre_header
                  _
                $region72: #{tpu_custom_call.1} parent=69 // loop_header
                  %s822 = sphi 0, %s826
                  %p823 = scmp.ge.s32.totalorder %s822, 1
                  %s827 = sphi %s787, %s787
                  %s828 = sphi %s795, %s795
                $region73: #{tpu_custom_call.1} parent=69 // loop_header_branch
                  %825 = sbr.rel (%p823) target = $region77
                $region74: #{tpu_custom_call.1} parent=69 // loop_body
                  %v829 = vld [vmem:[%s827] sm:$0xff]
                  %830 = vst [vmem:[%s828] sm:$0xff] %v829
                  %v831 = vld [vmem:[%s827 + $0x8] sm:$0xff]
                  %832 = vst [vmem:[%s828 + $0x10] sm:$0xff] %v831
                  %v833 = vld [vmem:[%s827 + $0x10] sm:$0xff]
                  %834 = vst [vmem:[%s828 + $0x20] sm:$0xff] %v833
                  %v835 = vld [vmem:[%s827 + $0x18] sm:$0xff]
                  %836 = vst [vmem:[%s828 + $0x30] sm:$0xff] %v835
                $region75: #{tpu_custom_call.1} parent=69 // loop_footer
                  %s826 = sadd.s32 1, %s822
                $region76: #{tpu_custom_call.1} parent=69 // loop_footer_branch
                  %821 = sbr.rel target = $region72
                $region77: #{tpu_custom_call.1} parent=69 // loop_exit
                  _
              $region70: #{tpu_custom_call.1} parent=54 // pred_fallthru
                _
              // Predicated region
              $region78: #{tpu_custom_call.1} parent=54 // pred_check
                _
              $region79: #{tpu_custom_call.1} parent=54 // pred_check_branch
                %838 = sbr.rel target = $region81
              $region80: #{tpu_custom_call.1} parent=54 // pred_region
                _
              $region81: #{tpu_custom_call.1} parent=54 // pred_fallthru
                _
            $region55: #{tpu_custom_call.1} parent=50 // pred_fallthru
              _
            // Predicated region
            $region56: #{tpu_custom_call.1} parent=50 // pred_check
              _
            $region57: #{tpu_custom_call.1} parent=50 // pred_check_branch
              %801 = sbr.rel target = $region59
            $region58: #{tpu_custom_call.1} parent=50 // pred_region
              loop: start=0, step=1, limit=1
              $region60: #{tpu_custom_call.1} parent=58 // loop_pre_header
                _
              $region61: #{tpu_custom_call.1} parent=58 // loop_header
                %s804 = sphi 0, %s808
                %p805 = scmp.ge.s32.totalorder %s804, 1
                %s809 = sphi %s787, %s787
                %s810 = sphi %s795, %s795
              $region62: #{tpu_custom_call.1} parent=58 // loop_header_branch
                %807 = sbr.rel (%p805) target = $region66
              $region63: #{tpu_custom_call.1} parent=58 // loop_body
                %v811 = vld [vmem:[%s809] sm:$0xff]
                %812 = vst [vmem:[%s810] sm:$0xff] %v811
                %v813 = vld [vmem:[%s809 + $0x8] sm:$0xff]
                %814 = vst [vmem:[%s810 + $0x10] sm:$0xff] %v813
                %v815 = vld [vmem:[%s809 + $0x10] sm:$0xff]
                %816 = vst [vmem:[%s810 + $0x20] sm:$0xff] %v815
                %v817 = vld [vmem:[%s809 + $0x18] sm:$0xff]
                %818 = vst [vmem:[%s810 + $0x30] sm:$0xff] %v817
              $region64: #{tpu_custom_call.1} parent=58 // loop_footer
                %s808 = sadd.s32 1, %s804
              $region65: #{tpu_custom_call.1} parent=58 // loop_footer_branch
                %803 = sbr.rel target = $region61
              $region66: #{tpu_custom_call.1} parent=58 // loop_exit
                _
            $region59: #{tpu_custom_call.1} parent=50 // pred_fallthru
              _
          $region51: #{tpu_custom_call.1} parent=46 // pred_fallthru
            _
          %839 = vnop
        $region47: #{tpu_custom_call.1} parent=35 // pred_fallthru
          _
      $region36: #{tpu_custom_call.1} parent=5 // pred_fallthru
        _
      %p840 = scmp.le.s32.totalorder 2, %s17
      // Predicated region
      $region82: #{tpu_custom_call.1} parent=5 // pred_check
        %p841 = pneg %p840
      $region83: #{tpu_custom_call.1} parent=5 // pred_check_branch
        %843 = sbr.rel (%p841) target = $region85
      $region84: #{tpu_custom_call.1} parent=5 // pred_region
        %s844 = ssub.s32 %s17, 2
        // Predicated region
        $region86: #{tpu_custom_call.1} parent=84 // pred_check
          %p845 = pneg %p159
        $region87: #{tpu_custom_call.1} parent=84 // pred_check_branch
          %847 = sbr.rel (%p845) target = $region89
        $region88: #{tpu_custom_call.1} parent=84 // pred_region
          %s848 = sand.u32 %s144, 1
          %s849 = sand.u32 %s144, 1
          %s850 = smul.addr %s849, 32
          %s851 = scalar_lea.vmem [#allocation4], %s850
        $region89: #{tpu_custom_call.1} parent=84 // pred_fallthru
          _
      $region85: #{tpu_custom_call.1} parent=5 // pred_fallthru
        _
    $region6: #{tpu_custom_call.1} parent=1 // loop_footer
      %s21 = sadd.s32 1, %s17
    $region7: #{tpu_custom_call.1} parent=1 // loop_footer_branch
      %16 = sbr.rel target = $region3
    $region8: #{tpu_custom_call.1} parent=1 // loop_exit
      _

</llo_original>
